<compile_context>
chip_gen: v6e
topology: v6e:2x2x1
jax: 0.10.0
libtpu: 0.0.40
codegen_flags: <defaults>
</compile_context>

<pallas_src>
import functools
import math

import jax
import jax.numpy as jnp
from jax import lax
from jax.experimental import pallas as pl
from jax.experimental.pallas import tpu as pltpu


_CHUNK = 512  # rows processed per inner-loop step (bounds VMEM temporaries)

_TWO_PI = 2.0 * math.pi
_TWO_OVER_PI = 2.0 / math.pi
# Cody-Waite split of pi/2 (2x the classic Cephes pi/4 split; hi/mid are exact f32).
_DP1 = 1.5703125
_DP2 = 4.837512969970703125e-4
_DP3 = 7.549789948768648e-8
# Cephes single-precision minimax coefficients on |r| <= pi/4.
_S1, _S2, _S3 = -1.6666654611e-1, 8.3321608736e-3, -1.9515295891e-4
_C1, _C2, _C3 = 4.166664568298827e-2, -1.388731625493765e-3, 2.443315711809948e-5


def _round_up(v, m):
    return -(-v // m) * m


def _sincos(proj):
    """Fused sin/cos: one shared range reduction, two short polynomials."""
    kf = jnp.floor(proj * _TWO_OVER_PI + 0.5)   # nearest multiple of pi/2
    k = kf.astype(jnp.int32)
    # 3-step Cody-Waite reduction: r = proj - kf*(pi/2), |r| <= pi/4 (+ eps)
    r = ((proj - kf * _DP1) - kf * _DP2) - kf * _DP3
    z = r * r
    sin_p = ((_S3 * z + _S2) * z + _S1) * z * r + r
    cos_p = ((_C3 * z + _C2) * z + _C1) * (z * z) - 0.5 * z + 1.0
    # Quadrant select (two's-complement & works for negative k as well).
    swap = (k & 1) == 1
    sin_mag = jnp.where(swap, cos_p, sin_p)
    cos_mag = jnp.where(swap, sin_p, cos_p)
    sin_out = jnp.where((k & 2) == 0, sin_mag, -sin_mag)
    cos_out = jnp.where(((k + 1) & 2) == 0, cos_mag, -cos_mag)
    return sin_out, cos_out


def _gfp_kernel(x_ref, b_ref, out_ref, *, half, chunk):
    # x_ref: (tile_b, 1) f32, b_ref: (1, half) f32, out_ref: (tile_b, 2*half)
    rows = out_ref.shape[0]          # static block size
    b_row = b_ref[...]               # resident (1, half)

    def emit(row0, nrows):
        xv = x_ref[pl.ds(row0, nrows), :]       # (nrows, 1)
        proj = _TWO_PI * xv * b_row             # broadcast outer product
        s, c = _sincos(proj)
        # torch.cat([sin, cos], dim=-1): columns [0:half) = sin, [half:) = cos
        out_ref[pl.ds(row0, nrows), :half] = s.astype(out_ref.dtype)
        out_ref[pl.ds(row0, nrows), half:] = c.astype(out_ref.dtype)

    nfull = rows // chunk
    if nfull > 0:
        def body(i, carry):
            emit(pl.multiple_of(i * chunk, chunk), chunk)
            return carry
        lax.fori_loop(0, nfull, body, 0, unroll=False)
    rem = rows - nfull * chunk       # static
    if rem:
        emit(nfull * chunk, rem)


def _vmem_capacity_bytes():
    try:
        cap = int(pltpu.get_tpu_info().vmem_capacity_bytes)
        if cap > 0:
            return cap
    except Exception:
        pass
    try:
        if "v7" in jax.devices()[0].device_kind.lower():
            return 64 << 20
    except Exception:
        pass
    return 128 << 20


def _choose_tile_b(batch, emb, vmem_cap):
    # Output-block byte target, generation aware: v7x has 64 MiB VMEM per TC,
    # v5e/v6e have 128 MiB.  Double-buffered blocks + x padding must fit.
    out_target = (8 << 20) if vmem_cap <= (64 << 20) else (16 << 20)
    rows = max(8, out_target // (4 * emb))
    if rows >= _CHUNK:
        rows = (rows // _CHUNK) * _CHUNK
    else:
        rows = max(8, (rows // 8) * 8)
    if batch >= 2 * _CHUNK:
        # Guarantee >= 2 grid steps so the "parallel" batch axis can actually
        # split across v7x's two TensorCores (no-op on single-TC v5e/v6e).
        split_cap = _round_up(pl.cdiv(batch, 2), _CHUNK)
        rows = min(rows, split_cap)
    return min(rows, batch)


def gaussian_fourier_projection(x, b, *, tile_b=None, out_dtype=jnp.float32):
    """x: (batch,) float, b: (half,) float -> (batch, 2*half) out_dtype."""
    batch = x.shape[0]
    half = b.shape[0]
    emb = 2 * half

    x2d = x.reshape(batch, 1).astype(jnp.float32)
    b2d = b.reshape(1, half).astype(jnp.float32)

    vmem_cap = _vmem_capacity_bytes()
    if tile_b is None:
        tile_b = _choose_tile_b(batch, emb, vmem_cap)
    chunk = min(_CHUNK, tile_b)
    grid = (pl.cdiv(batch, tile_b),)
    out_itemsize = jnp.dtype(out_dtype).itemsize

    # Explicit VMEM budget (double-buffered in/out + per-chunk temporaries).
    pad_rows = _round_up(tile_b, 8)
    lane_half = _round_up(half, 128)
    lane_emb = _round_up(emb, 128)
    out_block = pad_rows * lane_emb * out_itemsize
    x_block = pad_rows * 128 * 4           # (tile_b, 1) f32 pads lanes to 128
    b_block = 8 * lane_half * 4
    interm = 10 * _round_up(chunk, 8) * lane_half * 4   # fused-sincos temps
    need = 2 * (out_block + x_block + b_block) + interm + (2 << 20)
    vmem_limit = int(min(max(need, 16 << 20), vmem_cap - (8 << 20)))

    cost = pl.CostEstimate(
        flops=30 * batch * half,            # fused sincos ~30 VALU ops / elem
        transcendentals=0,                  # no EUP sin/cos on TPU
        bytes_accessed=4 * (batch + half) + batch * emb * out_itemsize,
    )

    out = pl.pallas_call(
        functools.partial(_gfp_kernel, half=half, chunk=chunk),
        out_shape=jax.ShapeDtypeStruct((batch, emb), out_dtype),
        grid_spec=pltpu.PrefetchScalarGridSpec(
            num_scalar_prefetch=0,
            grid=grid,
            in_specs=[
                pl.BlockSpec((tile_b, 1), lambda i: (i, 0)),   # x tile per step
                pl.BlockSpec((1, half), lambda i: (0, 0)),     # b resident
            ],
            out_specs=pl.BlockSpec((tile_b, emb), lambda i: (i, 0)),
        ),
        compiler_params=pltpu.CompilerParams(
            # Batch axis is independent; on v7x consider pltpu.CORE_PARALLEL
            # if xprof shows a single core running all steps.
            dimension_semantics=("parallel",),
            vmem_limit_bytes=vmem_limit,
        ),
        cost_estimate=cost,
    )(x2d, b2d)
    return out


def reference(x, b):
    proj = 2.0 * math.pi * x[:, None] * b[None, :]
    return jnp.concatenate([jnp.sin(proj), jnp.cos(proj)], axis=-1)


if __name__ == "__main__":
    key = jax.random.PRNGKey(0)
    k_b, k_x, k_b2, k_x2, k_x3 = jax.random.split(key, 5)
    scale = 16.0

    # Small demo shape (embedding_size=32 -> half=16), mirroring
    # torch.randn(half) * scale for the buffer and a 1-D timestep vector.
    embedding_size = 32
    batch = 8
    b_small = jax.random.normal(k_b, (embedding_size // 2,), jnp.float32) * scale
    x_small = jax.random.uniform(k_x, (batch,), jnp.float32)
    out = jax.block_until_ready(gaussian_fourier_projection(x_small, b_small))
    assert out.shape == (batch, embedding_size), out.shape
    assert jnp.allclose(out, reference(x_small, b_small), atol=1e-4, rtol=1e-4)

    # Realistic sgmse size: lane-aligned halves (emb=256), multi-step grid,
    # partial last grid block, in-kernel chunk loop.
    emb_big = 256
    b_big = jax.random.normal(k_b2, (emb_big // 2,), jnp.float32) * scale
    x_big = jax.random.uniform(k_x2, (4000,), jnp.float32)
    out_big = jax.block_until_ready(gaussian_fourier_projection(x_big, b_big))
    assert jnp.allclose(out_big, reference(x_big, b_big), atol=1e-4, rtol=1e-4)

    # Single-block ragged batch exercising the in-kernel remainder chunk.
    x_rag = jax.random.uniform(k_x3, (700,), jnp.float32)
    out_rag = jax.block_until_ready(gaussian_fourier_projection(x_rag, b_big))
    assert jnp.allclose(out_rag, reference(x_rag, b_big), atol=1e-4, rtol=1e-4)

    print("KERNEL_OK")
</pallas_src>

<mosaic_0001>
module attributes {stable_mosaic.version = 11 : i64} {
  func.func @_gfp_kernel(%arg0: i32, %arg1: memref<8x1xf32, #tpu.memory_space<vmem>>, %arg2: memref<1x16xf32, #tpu.memory_space<vmem>>, %arg3: memref<8x32xf32, #tpu.memory_space<vmem>>) attributes {dimension_semantics = [#tpu.dimension_semantics<parallel>], iteration_bounds = array<i64: 1>, scalar_prefetch = 0 : i64, scratch_operands = 0 : i64, tpu.core_type = #tpu.core_type<tc>, window_params = [{transform_indices = @transform_0, window_bounds = array<i64: 8, 1>}, {pipeline_mode = #tpu.pipeline_mode<synchronous>, transform_indices = @transform_1, window_bounds = array<i64: 1, 16>}, {transform_indices = @transform_2, window_bounds = array<i64: 8, 32>}]} {
    %c0 = arith.constant 0 : index
    %c0_0 = arith.constant 0 : index
    %0 = vector.load %arg2[%c0, %c0_0] : memref<1x16xf32, #tpu.memory_space<vmem>>, vector<1x16xf32>
    %c0_i32 = arith.constant 0 : i32
    %c8_i32 = arith.constant 8 : i32
    %1 = arith.muli %c0_i32, %c8_i32 : i32
    %2 = tpu.assume_multiple %1, 8 : i32
    %3 = arith.index_cast %2 : i32 to index
    %c0_1 = arith.constant 0 : index
    %4 = vector.load %arg1[%3, %c0_1] : memref<8x1xf32, #tpu.memory_space<vmem>>, vector<8x1xf32>
    %cst = arith.constant 6.28318548 : f32
    %5 = vector.broadcast %cst : f32 to vector<8x1xf32>
    %6 = arith.mulf %5, %4 : vector<8x1xf32>
    %7 = vector.broadcast %6 : vector<8x1xf32> to vector<8x16xf32>
    %8 = vector.broadcast %0 : vector<1x16xf32> to vector<8x16xf32>
    %9 = arith.mulf %7, %8 : vector<8x16xf32>
    %cst_2 = arith.constant 0.636619746 : f32
    %10 = vector.broadcast %cst_2 : f32 to vector<8x16xf32>
    %11 = arith.mulf %9, %10 : vector<8x16xf32>
    %cst_3 = arith.constant 5.000000e-01 : f32
    %12 = vector.broadcast %cst_3 : f32 to vector<8x16xf32>
    %13 = arith.addf %11, %12 : vector<8x16xf32>
    %14 = math.floor %13 : vector<8x16xf32>
    %15 = arith.fptosi %14 : vector<8x16xf32> to vector<8x16xi32>
    %cst_4 = arith.constant 1.5703125 : f32
    %16 = vector.broadcast %cst_4 : f32 to vector<8x16xf32>
    %17 = arith.mulf %14, %16 : vector<8x16xf32>
    %18 = arith.subf %9, %17 : vector<8x16xf32>
    %cst_5 = arith.constant 4.83751297E-4 : f32
    %19 = vector.broadcast %cst_5 : f32 to vector<8x16xf32>
    %20 = arith.mulf %14, %19 : vector<8x16xf32>
    %21 = arith.subf %18, %20 : vector<8x16xf32>
    %cst_6 = arith.constant 7.549790e-08 : f32
    %22 = vector.broadcast %cst_6 : f32 to vector<8x16xf32>
    %23 = arith.mulf %14, %22 : vector<8x16xf32>
    %24 = arith.subf %21, %23 : vector<8x16xf32>
    %25 = arith.mulf %24, %24 : vector<8x16xf32>
    %cst_7 = arith.constant -1.95152956E-4 : f32
    %26 = vector.broadcast %cst_7 : f32 to vector<8x16xf32>
    %27 = arith.mulf %26, %25 : vector<8x16xf32>
    %cst_8 = arith.constant 0.00833216123 : f32
    %28 = vector.broadcast %cst_8 : f32 to vector<8x16xf32>
    %29 = arith.addf %27, %28 : vector<8x16xf32>
    %30 = arith.mulf %29, %25 : vector<8x16xf32>
    %cst_9 = arith.constant -0.166666552 : f32
    %31 = vector.broadcast %cst_9 : f32 to vector<8x16xf32>
    %32 = arith.addf %30, %31 : vector<8x16xf32>
    %33 = arith.mulf %32, %25 : vector<8x16xf32>
    %34 = arith.mulf %33, %24 : vector<8x16xf32>
    %35 = arith.addf %34, %24 : vector<8x16xf32>
    %cst_10 = arith.constant 2.44331568E-5 : f32
    %36 = vector.broadcast %cst_10 : f32 to vector<8x16xf32>
    %37 = arith.mulf %36, %25 : vector<8x16xf32>
    %cst_11 = arith.constant -0.00138873165 : f32
    %38 = vector.broadcast %cst_11 : f32 to vector<8x16xf32>
    %39 = arith.addf %37, %38 : vector<8x16xf32>
    %40 = arith.mulf %39, %25 : vector<8x16xf32>
    %cst_12 = arith.constant 0.0416666456 : f32
    %41 = vector.broadcast %cst_12 : f32 to vector<8x16xf32>
    %42 = arith.addf %40, %41 : vector<8x16xf32>
    %43 = arith.mulf %25, %25 : vector<8x16xf32>
    %44 = arith.mulf %42, %43 : vector<8x16xf32>
    %cst_13 = arith.constant 5.000000e-01 : f32
    %45 = vector.broadcast %cst_13 : f32 to vector<8x16xf32>
    %46 = arith.mulf %45, %25 : vector<8x16xf32>
    %47 = arith.subf %44, %46 : vector<8x16xf32>
    %cst_14 = arith.constant 1.000000e+00 : f32
    %48 = vector.broadcast %cst_14 : f32 to vector<8x16xf32>
    %49 = arith.addf %47, %48 : vector<8x16xf32>
    %c1_i32 = arith.constant 1 : i32
    %50 = vector.broadcast %c1_i32 : i32 to vector<8x16xi32>
    %51 = arith.andi %15, %50 : vector<8x16xi32>
    %c1_i32_15 = arith.constant 1 : i32
    %52 = vector.broadcast %c1_i32_15 : i32 to vector<8x16xi32>
    %53 = arith.cmpi eq, %51, %52 : vector<8x16xi32>
    %54 = arith.select %53, %49, %35 : vector<8x16xi1>, vector<8x16xf32>
    %55 = arith.select %53, %35, %49 : vector<8x16xi1>, vector<8x16xf32>
    %c2_i32 = arith.constant 2 : i32
    %56 = vector.broadcast %c2_i32 : i32 to vector<8x16xi32>
    %57 = arith.andi %15, %56 : vector<8x16xi32>
    %c0_i32_16 = arith.constant 0 : i32
    %58 = vector.broadcast %c0_i32_16 : i32 to vector<8x16xi32>
    %59 = arith.cmpi eq, %57, %58 : vector<8x16xi32>
    %cst_17 = arith.constant 0.000000e+00 : f32
    %60 = vector.broadcast %cst_17 : f32 to vector<8x16xf32>
    %61 = arith.subf %60, %54 : vector<8x16xf32>
    %62 = arith.select %59, %54, %61 : vector<8x16xi1>, vector<8x16xf32>
    %c1_i32_18 = arith.constant 1 : i32
    %63 = vector.broadcast %c1_i32_18 : i32 to vector<8x16xi32>
    %64 = arith.addi %15, %63 : vector<8x16xi32>
    %c2_i32_19 = arith.constant 2 : i32
    %65 = vector.broadcast %c2_i32_19 : i32 to vector<8x16xi32>
    %66 = arith.andi %64, %65 : vector<8x16xi32>
    %c0_i32_20 = arith.constant 0 : i32
    %67 = vector.broadcast %c0_i32_20 : i32 to vector<8x16xi32>
    %68 = arith.cmpi eq, %66, %67 : vector<8x16xi32>
    %cst_21 = arith.constant 0.000000e+00 : f32
    %69 = vector.broadcast %cst_21 : f32 to vector<8x16xf32>
    %70 = arith.subf %69, %55 : vector<8x16xf32>
    %71 = arith.select %68, %55, %70 : vector<8x16xi1>, vector<8x16xf32>
    %72 = arith.index_cast %2 : i32 to index
    %c0_22 = arith.constant 0 : index
    %73 = vector.load %arg3[%72, %c0_22] : memref<8x32xf32, #tpu.memory_space<vmem>>, vector<8x16xf32>
    tpu.vector_store %arg3[%72, %c0_22], %62 {strides = array<i32>} : memref<8x32xf32, #tpu.memory_space<vmem>>, vector<8x16xf32>,
    %74 = arith.index_cast %2 : i32 to index
    %c16 = arith.constant 16 : index
    %75 = vector.load %arg3[%74, %c16] : memref<8x32xf32, #tpu.memory_space<vmem>>, vector<8x16xf32>
    tpu.vector_store %arg3[%74, %c16], %71 {strides = array<i32>} : memref<8x32xf32, #tpu.memory_space<vmem>>, vector<8x16xf32>,
    %c1_i32_23 = arith.constant 1 : i32
    return
  }
  func.func @transform_0(%arg0: i32) -> (i32, i32) {
    %c0_i32 = arith.constant 0 : i32
    %c0_i32_0 = arith.constant 0 : i32
    return %arg0, %c0_i32 : i32, i32
  }
  func.func @transform_1(%arg0: i32) -> (i32, i32) {
    %c0_i32 = arith.constant 0 : i32
    %c0_i32_0 = arith.constant 0 : i32
    %c0_i32_1 = arith.constant 0 : i32
    return %c0_i32, %c0_i32_0 : i32, i32
  }
  func.func @transform_2(%arg0: i32) -> (i32, i32) {
    %c0_i32 = arith.constant 0 : i32
    %c0_i32_0 = arith.constant 0 : i32
    return %arg0, %c0_i32 : i32, i32
  }
}

</mosaic_0001>

<llo_original>
// kernel: tpu_custom_call.1
$region0: #{tpu_custom_call.1}
  #allocation0 [shape = 'u32[]', space=smem, size = 0x4, offset = 0x4, fixed_abs, tag = 'smem constant byte address 0x4 - core index']
  #allocation1 [shape = 'u32[144,128]{1,0:T(1,128)}', space=vmem, size = 0x12000, scoped, tag = 'internal scratch']
  %s0 = inlined_call_operand.vmem [shape: f32[8,1], index: 0, kind: input, shape index: {}]
  %s1 = inlined_call_operand.vmem [shape: f32[1,16], index: 1, kind: input, shape index: {}]
  %s2 = inlined_call_operand.hbm [shape: f32[8,32], index: 2, kind: output, shape index: {}]
  %s3 = sld [smem:[#allocation0]]
  $region18: #{tpu_custom_call.1} parent=0
    _
  %s5 = ssub.s32 1, %s3
  %s6 = scalar_select 0, %s5, %s3
  $region1: #{tpu_custom_call.1} parent=0
    #allocation2 [shape = 'u8[4096]{0}', space=vmem, size = 0x1000, scoped, tag = 'output window, operand 0, single buffered']
    #allocation3 [shape = 's32[1]{0}', space=sflag, size = 0x4, scoped, tag = 'scoped memory for tpu_custom_call.1']
    %7 = vsyncpa [#allocation3], 0
    // Predicated region
    $region2: #{tpu_custom_call.1} parent=1 // pred_check
      _
    $region3: #{tpu_custom_call.1} parent=1 // pred_check_branch
      %9 = sbr.rel (0) target = $region5
    $region4: #{tpu_custom_call.1} parent=1 // pred_region
      _
    $region5: #{tpu_custom_call.1} parent=1 // pred_fallthru
      _
    // Predicated region
    $region6: #{tpu_custom_call.1} parent=1 // pred_check
      _
    $region7: #{tpu_custom_call.1} parent=1 // pred_check_branch
      %11 = sbr.rel (0) target = $region9
    $region8: #{tpu_custom_call.1} parent=1 // pred_region
      _
    $region9: #{tpu_custom_call.1} parent=1 // pred_fallthru
      _
    %v12 = vld [vmem:[%s1] sm:$0x1]
    %v13 = vld [vmem:[%s0] sm:$0xff]
    %v14 = vmul.f32 %v13, 6.2831855
    %16 = vset.pattern.permute.xlu0 0
    %17 = vperm.xlu0 %16, %v14
    %v18 = vpop.permute.xlu0 %17
    %v21 = vlaneseq
    %v22 = vshrl.u32 %v21, 7
    %v23 = vsub.s32 0, %v22
    %v24 = vrot.slane %v12, %v23
    %v26 = vmul.f32 %v18, %v24
    %v27 = vmul.f32 %v26, 0.63661975
    %v28 = vadd.f32 %v27, 0.5
    %v29 = vfloor.f32 %v28
    %v30 = vcvt.f32.s32.to.zero.pseudo %v29
    %v31 = vmul.f32 %v29, 1.5703125
    %v32 = vsub.f32 %v26, %v31
    %v33 = vmul.f32 %v29, 0.0004837513
    %v34 = vsub.f32 %v32, %v33
    %v35 = vmul.f32 %v29, 7.54979e-08
    %v36 = vsub.f32 %v34, %v35
    %v37 = vmul.f32 %v36, %v36
    %v38 = vmul.f32 %v37, -0.00019515296
    %v39 = vadd.f32 %v38, 0.008332161
    %v40 = vmul.f32 %v39, %v37
    %v41 = vadd.f32 %v40, -0.16666655
    %v42 = vmul.f32 %v41, %v37
    %v43 = vmul.f32 %v42, %v36
    %v44 = vadd.f32 %v43, %v36
    %v45 = vmul.f32 %v37, 2.4433157e-05
    %v46 = vadd.f32 %v45, -0.0013887316
    %v47 = vmul.f32 %v46, %v37
    %v48 = vadd.f32 %v47, 0.041666646
    %v49 = vmul.f32 %v37, %v37
    %v50 = vmul.f32 %v48, %v49
    %v51 = vmul.f32 %v37, 0.5
    %v52 = vsub.f32 %v50, %v51
    %v53 = vadd.f32 %v52, 1.0
    %v54 = vand.u32 %v30, 1
    %vm55 = vcmp.eq.s32.totalorder %v54, 1
    %v56 = vsel %vm55, %v53, %v44
    %v57 = vsel %vm55, %v44, %v53
    %v58 = vand.u32 %v30, 2
    %vm59 = vcmp.eq.s32.totalorder %v58, 0
    %v60 = vsub.f32 0.0, %v56
    %v61 = vsel %vm59, %v56, %v60
    %v62 = vadd.s32 %v30, 1
    %v63 = vand.u32 %v62, 2
    %vm64 = vcmp.eq.s32.totalorder %v63, 0
    %v65 = vsub.f32 0.0, %v57
    %v66 = vsel %vm64, %v57, %v65
    %vm67 = vcmask 130048
    %68 = vst.msk [vmem:[#allocation2] sm:$0xff] %vm67, %v61
    %70 = vrot.lane.b32.xlu0 %v66, 16
    %v71 = vpop.permute.xlu0 %70
    %vm73 = vcmask 261248
    %74 = vst.msk [vmem:[#allocation2] sm:$0xff] %vm73, %v71
    // Predicated region
    $region10: #{tpu_custom_call.1} parent=1 // pred_check
      _
    $region11: #{tpu_custom_call.1} parent=1 // pred_check_branch
      %76 = sbr.rel (0) target = $region13
    $region12: #{tpu_custom_call.1} parent=1 // pred_region
      %s78 = ssub.s32 128, 128
      %79 = vsyncadd [#allocation3], %s78
      %s81 = sshll.u32 [#allocation2], 4
      %s82 = int_to_ptr.vmem [resolvable:$true] %s81
      %84 = dma.vmem_to_hbm [thread:$0]  %s82, 128, %s2, [#allocation3]
    $region13: #{tpu_custom_call.1} parent=1 // pred_fallthru
      _
    // Predicated region
    $region14: #{tpu_custom_call.1} parent=1 // pred_check
      _
    $region15: #{tpu_custom_call.1} parent=1 // pred_check_branch
      %86 = sbr.rel (0) target = $region17
    $region16: #{tpu_custom_call.1} parent=1 // pred_region
      %87 = dma.done [#allocation3], 128
    $region17: #{tpu_custom_call.1} parent=1 // pred_fallthru
      _
    %88 = vsyncpa [#allocation3], 1

</llo_original>
